<compile_context>
chip_gen: v6e
topology: v6e:2x2x1
jax: 0.10.0
libtpu: 0.0.40
codegen_flags: <defaults>
</compile_context>

<pallas_src>
import functools

import jax
import jax.numpy as jnp
from jax.experimental import pallas as pl
from jax.experimental.pallas import tpu as pltpu

_LANE = 128      # lane width
_ROW = 16        # bf16-safe row (sublane) granularity for batch tiles


def _round_up(x: int, m: int) -> int:
    return ((x + m - 1) // m) * m


def _qnn_kernel(x_ref, w1_ref, b1_ref, w2_ref, b2_ref, o_ref):
    # Cast the streamed f32 x tile to the MXU dtype only at the dot boundary.
    x = x_ref[...].astype(w1_ref.dtype)
    # linear1 on the MXU: bf16 x bf16 -> f32 accumulator
    h = jnp.dot(x, w1_ref[...], preferred_element_type=jnp.float32)
    # bias add + ReLU in f32 on the VPU (v5e has no bf16 VPU)
    h = jnp.maximum(h + b1_ref[...], 0.0)
    # linear2 on the MXU
    out = jnp.dot(h.astype(w2_ref.dtype), w2_ref[...],
                  preferred_element_type=jnp.float32)
    o_ref[...] = (out + b2_ref[...]).astype(o_ref.dtype)


def prepare_params(w1, b1, w2, b2, *, mxu_dtype=jnp.bfloat16):
    """One-time weight prep (hoisted out of the forward path).

    Args (torch layout pre-transposed to (in, out)):
      w1: (inputSize, hidden)   f32
      b1: (hidden,)             f32
      w2: (hidden, outputSize)  f32
      b2: (outputSize,)         f32
    Returns padded / bf16-cast (w1_p, b1_p, w2_p, b2_p).
    Zero padding is exact for Linear -> ReLU -> Linear.
    """
    in_size, hid = w1.shape
    out = w2.shape[1]
    hid_p = _round_up(hid, _LANE)
    # Pad the output dim only when it is wide enough for unmasked stores to
    # matter; a narrow full-extent last dim is legal and minimizes writeback.
    out_p = _round_up(out, _LANE) if out >= _LANE else out

    w1_p = jnp.zeros((in_size, hid_p), mxu_dtype).at[:, :hid].set(
        w1.astype(mxu_dtype))
    b1_p = jnp.zeros((1, hid_p), jnp.float32).at[0, :hid].set(
        b1.astype(jnp.float32))
    w2_p = jnp.zeros((hid_p, out_p), mxu_dtype).at[:hid, :out].set(
        w2.astype(mxu_dtype))
    b2_p = jnp.zeros((1, out_p), jnp.float32).at[0, :out].set(
        b2.astype(jnp.float32))
    return w1_p, b1_p, w2_p, b2_p


def _vmem_capacity_bytes() -> int:
    cap = 64 * 1024 * 1024  # conservative default = v7x per-core VMEM
    try:
        cap = int(getattr(pltpu.get_tpu_info(), "vmem_capacity_bytes", cap))
    except Exception:
        pass
    return cap


def linear_qnn_forward(x, w1_p, b1_p, w2_p, b2_p, *, out_size=None,
                       block_b=2048):
    """Fused LinearQNN forward.

    x:    (B, inputSize) f32 (unpadded, un-cast — cast happens in-kernel)
    w*/b*: outputs of prepare_params
    """
    B, in_size = x.shape
    hid_p = w1_p.shape[1]
    out_p = w2_p.shape[1]
    if out_size is None:
        out_size = out_p

    # ---- generation-aware VMEM budget --------------------------------------
    vmem_cap = _vmem_capacity_bytes()
    budget = int(vmem_cap * 0.6)  # headroom for the f32 h temp + Mosaic scratch

    # Resident weights (auto-pipeline double-buffers even constant blocks).
    wbytes = 2 * (w1_p.size * w1_p.dtype.itemsize
                  + w2_p.size * w2_p.dtype.itemsize
                  + b1_p.size * b1_p.dtype.itemsize
                  + b2_p.size * b2_p.dtype.itemsize)
    if wbytes >= budget:
        # Large hidden sizes need a K-tiled reduction grid axis with an f32
        # accumulator scratch instead of fully-resident weights.
        raise NotImplementedError(
            "resident weights exceed the per-core VMEM budget "
            f"({wbytes} >= {budget} bytes); a K-tiled variant is required")

    # Per-batch-row bytes: double-buffered x tile + out tile, plus the f32
    # hidden activation live during compute.
    per_row = 2 * in_size * 4 + 2 * out_p * 4 + hid_p * 4
    tb_max = max(_ROW, ((budget - wbytes) // per_row) // _ROW * _ROW)
    tb = min(block_b, tb_max)

    # Keep both v7x TensorCores busy: moderate batches get >= 2 grid tiles.
    if B >= 2 * _ROW:
        tb = min(tb, _round_up(pl.cdiv(B, 2), _ROW))
    tb = max(_ROW, min(tb, _round_up(B, _ROW)))

    b_p = _round_up(B, tb)
    n_tiles = b_p // tb

    # Pad x along the batch dim only when the last tile is ragged.
    x_in = x if b_p == B else jnp.zeros((b_p, in_size), x.dtype).at[:B].set(x)

    flops = 2 * b_p * (in_size * hid_p + hid_p * out_p)
    bytes_accessed = (b_p * in_size * 4 + b_p * out_p * 4
                      + w1_p.size * w1_p.dtype.itemsize
                      + w2_p.size * w2_p.dtype.itemsize
                      + b1_p.size * 4 + b2_p.size * 4)
    cost = pl.CostEstimate(flops=flops, transcendentals=0,
                           bytes_accessed=bytes_accessed)

    vmem_limit = min(int(vmem_cap * 0.9),
                     max(wbytes + per_row * tb + (8 << 20), 32 << 20))

    grid_spec = pltpu.PrefetchScalarGridSpec(
        num_scalar_prefetch=0,
        grid=(n_tiles,),
        in_specs=[
            # streamed activation: unpadded f32, full-extent feature dim
            pl.BlockSpec((tb, in_size), lambda i: (i, 0)),
            # weights / biases: constant block index -> resident in VMEM
            pl.BlockSpec((in_size, hid_p), lambda i: (0, 0)),
            pl.BlockSpec((1, hid_p), lambda i: (0, 0)),
            pl.BlockSpec((hid_p, out_p), lambda i: (0, 0)),
            pl.BlockSpec((1, out_p), lambda i: (0, 0)),
        ],
        out_specs=pl.BlockSpec((tb, out_p), lambda i: (i, 0)),
    )

    out_full = pl.pallas_call(
        _qnn_kernel,
        out_shape=jax.ShapeDtypeStruct((b_p, out_p), x.dtype),
        grid_spec=grid_spec,
        compiler_params=pltpu.CompilerParams(
            dimension_semantics=("parallel",),
            vmem_limit_bytes=vmem_limit,
        ),
        cost_estimate=cost,
    )(x_in, w1_p, b1_p, w2_p, b2_p)

    out = out_full if b_p == B else out_full[:B]
    if out_p != out_size:
        out = out[:, :out_size]
    return out


def init_params(key, input_size, hidden_size, output_size):
    """Deterministic init matching nn.Linear (weights returned pre-transposed)."""
    k1, k2, k3, k4 = jax.random.split(key, 4)
    bound1 = 1.0 / jnp.sqrt(jnp.float32(input_size))
    bound2 = 1.0 / jnp.sqrt(jnp.float32(hidden_size))
    w1_t = jax.random.uniform(k1, (hidden_size, input_size),
                              minval=-bound1, maxval=bound1, dtype=jnp.float32)
    b1 = jax.random.uniform(k2, (hidden_size,), minval=-bound1, maxval=bound1,
                            dtype=jnp.float32)
    w2_t = jax.random.uniform(k3, (output_size, hidden_size),
                              minval=-bound2, maxval=bound2, dtype=jnp.float32)
    b2 = jax.random.uniform(k4, (output_size,), minval=-bound2, maxval=bound2,
                            dtype=jnp.float32)
    return w1_t.T, b1, w2_t.T, b2   # pre-transpose to (in, out)


if __name__ == "__main__":
    # Small shapes consistent with LinearQNN(inputSize, hidden, out).
    batch, input_size, hidden_size, output_size = 8, 16, 32, 4

    key = jax.random.PRNGKey(0)
    kx, kp = jax.random.split(key)
    x = jax.random.normal(kx, (batch, input_size), dtype=jnp.float32)
    w1, b1, w2, b2 = init_params(kp, input_size, hidden_size, output_size)

    # One-time weight prep (padding + bf16 cast hoisted out of the hot path).
    w1_p, b1_p, w2_p, b2_p = prepare_params(w1, b1, w2, b2)

    fwd = jax.jit(functools.partial(linear_qnn_forward, out_size=output_size))
    out = jax.block_until_ready(fwd(x, w1_p, b1_p, w2_p, b2_p))

    # Pure-JAX f32 reference; tolerance loosened because MXU inputs are bf16.
    ref = jnp.maximum(x @ w1 + b1, 0.0) @ w2 + b2
    assert out.shape == (batch, output_size)
    assert jnp.allclose(out, ref, atol=2e-2, rtol=2e-2), (
        jnp.max(jnp.abs(out - ref)))

    print("KERNEL_OK")
</pallas_src>

<mosaic_0001>
module attributes {stable_mosaic.version = 11 : i64} {
  func.func @_qnn_kernel(%arg0: i32, %arg1: memref<16x16xf32, #tpu.memory_space<vmem>>, %arg2: memref<16x128xbf16, #tpu.memory_space<vmem>>, %arg3: memref<1x128xf32, #tpu.memory_space<vmem>>, %arg4: memref<128x4xbf16, #tpu.memory_space<vmem>>, %arg5: memref<1x4xf32, #tpu.memory_space<vmem>>, %arg6: memref<16x4xf32, #tpu.memory_space<vmem>>) attributes {dimension_semantics = [#tpu.dimension_semantics<parallel>], iteration_bounds = array<i64: 1>, scalar_prefetch = 0 : i64, scratch_operands = 0 : i64, tpu.core_type = #tpu.core_type<tc>, window_params = [{transform_indices = @transform_0, window_bounds = array<i64: 16, 16>}, {pipeline_mode = #tpu.pipeline_mode<synchronous>, transform_indices = @transform_1, window_bounds = array<i64: 16, 128>}, {pipeline_mode = #tpu.pipeline_mode<synchronous>, transform_indices = @transform_2, window_bounds = array<i64: 1, 128>}, {pipeline_mode = #tpu.pipeline_mode<synchronous>, transform_indices = @transform_3, window_bounds = array<i64: 128, 4>}, {pipeline_mode = #tpu.pipeline_mode<synchronous>, transform_indices = @transform_4, window_bounds = array<i64: 1, 4>}, {transform_indices = @transform_5, window_bounds = array<i64: 16, 4>}]} {
    %c0 = arith.constant 0 : index
    %c0_0 = arith.constant 0 : index
    %0 = vector.load %arg1[%c0, %c0_0] : memref<16x16xf32, #tpu.memory_space<vmem>>, vector<16x16xf32>
    %1 = arith.truncf %0 : vector<16x16xf32> to vector<16x16xbf16>
    %c0_1 = arith.constant 0 : index
    %c0_2 = arith.constant 0 : index
    %2 = vector.load %arg2[%c0_1, %c0_2] : memref<16x128xbf16, #tpu.memory_space<vmem>>, vector<16x128xbf16>
    %cst = arith.constant dense<0.000000e+00> : vector<16x128xf32>
    %3 = tpu.matmul %1, %2, %cst {dimension_numbers = #tpu.dot_dimension_numbers<[1], [0], [0], [1], [0, 0, 1, 1], [], []>} : vector<16x16xbf16>, vector<16x128xbf16>, vector<16x128xf32> -> vector<16x128xf32>
    %c0_3 = arith.constant 0 : index
    %c0_4 = arith.constant 0 : index
    %4 = vector.load %arg3[%c0_3, %c0_4] : memref<1x128xf32, #tpu.memory_space<vmem>>, vector<1x128xf32>
    %5 = vector.broadcast %4 : vector<1x128xf32> to vector<16x128xf32>
    %6 = arith.addf %3, %5 : vector<16x128xf32>
    %cst_5 = arith.constant 0.000000e+00 : f32
    %7 = vector.broadcast %cst_5 : f32 to vector<16x128xf32>
    %8 = arith.maximumf %6, %7 : vector<16x128xf32>
    %9 = arith.truncf %8 : vector<16x128xf32> to vector<16x128xbf16>
    %c0_6 = arith.constant 0 : index
    %c0_7 = arith.constant 0 : index
    %10 = vector.load %arg4[%c0_6, %c0_7] : memref<128x4xbf16, #tpu.memory_space<vmem>>, vector<128x4xbf16>
    %cst_8 = arith.constant dense<0.000000e+00> : vector<16x4xf32>
    %11 = tpu.matmul %9, %10, %cst_8 {dimension_numbers = #tpu.dot_dimension_numbers<[1], [0], [0], [1], [0, 0, 1, 1], [], []>} : vector<16x128xbf16>, vector<128x4xbf16>, vector<16x4xf32> -> vector<16x4xf32>
    %c0_9 = arith.constant 0 : index
    %c0_10 = arith.constant 0 : index
    %12 = vector.load %arg5[%c0_9, %c0_10] : memref<1x4xf32, #tpu.memory_space<vmem>>, vector<1x4xf32>
    %13 = vector.broadcast %12 : vector<1x4xf32> to vector<16x4xf32>
    %14 = arith.addf %11, %13 : vector<16x4xf32>
    %c0_11 = arith.constant 0 : index
    %c0_12 = arith.constant 0 : index
    %15 = vector.load %arg6[%c0_11, %c0_12] : memref<16x4xf32, #tpu.memory_space<vmem>>, vector<16x4xf32>
    tpu.vector_store %arg6[%c0_11, %c0_12], %14 {strides = array<i32>} : memref<16x4xf32, #tpu.memory_space<vmem>>, vector<16x4xf32>,
    return
  }
  func.func @transform_0(%arg0: i32) -> (i32, i32) {
    %c0_i32 = arith.constant 0 : i32
    %c0_i32_0 = arith.constant 0 : i32
    return %arg0, %c0_i32 : i32, i32
  }
  func.func @transform_1(%arg0: i32) -> (i32, i32) {
    %c0_i32 = arith.constant 0 : i32
    %c0_i32_0 = arith.constant 0 : i32
    %c0_i32_1 = arith.constant 0 : i32
    return %c0_i32, %c0_i32_0 : i32, i32
  }
  func.func @transform_2(%arg0: i32) -> (i32, i32) {
    %c0_i32 = arith.constant 0 : i32
    %c0_i32_0 = arith.constant 0 : i32
    %c0_i32_1 = arith.constant 0 : i32
    return %c0_i32, %c0_i32_0 : i32, i32
  }
  func.func @transform_3(%arg0: i32) -> (i32, i32) {
    %c0_i32 = arith.constant 0 : i32
    %c0_i32_0 = arith.constant 0 : i32
    %c0_i32_1 = arith.constant 0 : i32
    return %c0_i32, %c0_i32_0 : i32, i32
  }
  func.func @transform_4(%arg0: i32) -> (i32, i32) {
    %c0_i32 = arith.constant 0 : i32
    %c0_i32_0 = arith.constant 0 : i32
    %c0_i32_1 = arith.constant 0 : i32
    return %c0_i32, %c0_i32_0 : i32, i32
  }
  func.func @transform_5(%arg0: i32) -> (i32, i32) {
    %c0_i32 = arith.constant 0 : i32
    %c0_i32_0 = arith.constant 0 : i32
    return %arg0, %c0_i32 : i32, i32
  }
}

</mosaic_0001>

<llo_original>
// kernel: linear_qnn_forward.1
$region0: #{linear_qnn_forward.1}
  #allocation0 [shape = 'u32[]', space=smem, size = 0x4, offset = 0x4, fixed_abs, tag = 'smem constant byte address 0x4 - core index']
  #allocation1 [shape = 'u32[144,128]{1,0:T(1,128)}', space=vmem, size = 0x12000, scoped, tag = 'internal scratch']
  %s0 = inlined_call_operand.vmem [shape: f32[16,16], index: 0, kind: input, shape index: {}]
  %s1 = inlined_call_operand.vmem [shape: bf16[16,128], index: 1, kind: input, shape index: {}]
  %s2 = inlined_call_operand.vmem [shape: f32[1,128], index: 2, kind: input, shape index: {}]
  %s3 = inlined_call_operand.vmem [shape: bf16[128,4], index: 3, kind: input, shape index: {}]
  %s4 = inlined_call_operand.vmem [shape: f32[1,4], index: 4, kind: input, shape index: {}]
  %s5 = inlined_call_operand.vmem [shape: f32[16,4], index: 5, kind: output, shape index: {}]
  %s6 = sld [smem:[#allocation0]]
  $region30: #{linear_qnn_forward.1} parent=0
    _
  %s8 = ssub.s32 1, %s6
  %s9 = scalar_select 0, %s8, %s6
  // Predicated region
  $region2: #{linear_qnn_forward.1} parent=0 // pred_check
    _
  $region3: #{linear_qnn_forward.1} parent=0 // pred_check_branch
    %11 = sbr.rel (0) target = $region5
  $region4: #{linear_qnn_forward.1} parent=0 // pred_region
    _
  $region5: #{linear_qnn_forward.1} parent=0 // pred_fallthru
    _
  // Predicated region
  $region6: #{linear_qnn_forward.1} parent=0 // pred_check
    _
  $region7: #{linear_qnn_forward.1} parent=0 // pred_check_branch
    %13 = sbr.rel (0) target = $region9
  $region8: #{linear_qnn_forward.1} parent=0 // pred_region
    _
  $region9: #{linear_qnn_forward.1} parent=0 // pred_fallthru
    _
  // Predicated region
  $region10: #{linear_qnn_forward.1} parent=0 // pred_check
    _
  $region11: #{linear_qnn_forward.1} parent=0 // pred_check_branch
    %15 = sbr.rel (0) target = $region13
  $region12: #{linear_qnn_forward.1} parent=0 // pred_region
    _
  $region13: #{linear_qnn_forward.1} parent=0 // pred_fallthru
    _
  // Predicated region
  $region14: #{linear_qnn_forward.1} parent=0 // pred_check
    _
  $region15: #{linear_qnn_forward.1} parent=0 // pred_check_branch
    %17 = sbr.rel (0) target = $region17
  $region16: #{linear_qnn_forward.1} parent=0 // pred_region
    _
  $region17: #{linear_qnn_forward.1} parent=0 // pred_fallthru
    _
  // Predicated region
  $region18: #{linear_qnn_forward.1} parent=0 // pred_check
    _
  $region19: #{linear_qnn_forward.1} parent=0 // pred_check_branch
    %19 = sbr.rel (0) target = $region21
  $region20: #{linear_qnn_forward.1} parent=0 // pred_region
    _
  $region21: #{linear_qnn_forward.1} parent=0 // pred_fallthru
    _
  %v21 = vld [vmem:[%s0] sm:$0xff]
  %v22 = vld [vmem:[%s0 + $0x8] sm:$0xff]
  %v23 = vpack.c.bf16 %v22, %v21
  %v24 = vld [vmem:[%s1] sm:$0xf]
  %v25 = vld [vmem:[%s1 + $0x4] sm:$0xf]
  %v26 = vld [vmem:[%s2] sm:$0x1]
  %v28 = vlaneseq
  %v29 = vshrl.u32 %v28, 7
  %v30 = vsub.s32 0, %v29
  %v31 = vrot.slane %v26, %v30
  %v35 = vunpack.c.l.b16 %v24
  %v36 = vunpack.c.l.b16 %v25
  %v37 = vpack.c.b16 %v36, %v35
  %vm39 = vcmask 130048
  %v41 = vsel %vm39, %v23, 0
  %43 = vmatprep.subr.bf16.mxu0 0
  %44 = vmatpush1.bf16.msra.mxu0 0
  %45 = vmatprep.subr.bf16.mxu0 0
  %46 = vmatpush1.bf16.msra.mxu0 0
  %47 = vmatprep.subr.bf16.mxu0 0
  %48 = vmatpush1.bf16.msra.mxu0 0
  %49 = vmatprep.subr.bf16.mxu0 0
  %50 = vmatpush1.bf16.msra.mxu0 0
  %51 = vmatprep.subr.bf16.mxu0 0
  %52 = vmatpush1.bf16.msra.mxu0 0
  %53 = vmatprep.subr.bf16.mxu0 0
  %54 = vmatpush1.bf16.msra.mxu0 0
  %55 = vmatprep.subr.bf16.mxu0 0
  %56 = vmatpush1.bf16.msra.mxu0 0
  %57 = vmatprep.subr.bf16.mxu0 0
  %58 = vmatpush1.bf16.msra.mxu0 %v37
  %59 = vmatprep.subr.bf16.mxu0 0
  %60 = vmatpush2.bf16.msra.mxu0 0
  %61 = vmatprep.subr.bf16.mxu0 0
  %62 = vmatpush2.bf16.msra.mxu0 0
  %63 = vmatprep.subr.bf16.mxu0 0
  %64 = vmatpush2.bf16.msra.mxu0 0
  %65 = vmatprep.subr.bf16.mxu0 0
  %66 = vmatpush2.bf16.msra.mxu0 0
  %67 = vmatprep.subr.bf16.mxu0 0
  %68 = vmatpush2.bf16.msra.mxu0 0
  %69 = vmatprep.subr.bf16.mxu0 0
  %70 = vmatpush2.bf16.msra.mxu0 0
  %71 = vmatprep.subr.bf16.mxu0 0
  %72 = vmatpush2.bf16.msra.mxu0 0
  %73 = vmatprep.subr.bf16.mxu0 0
  %74 = vmatpush2.bf16.msra.mxu0 0
  %75 = vmatprep.mubr.bf16.mxu0 0
  %76 = vmatmul.mubr.bf16.gmra.mxu0 %v41
  %v77 = vpop.f32.mrf.mxu0
  %v78 = vadd.f32 %v31, %v77
  %v79 = vpop.f32.mrf.mxu0
  %v80 = vpop.f32.mrf.mxu0
  %v81 = vadd.f32 %v31, %v80
  %v82 = vpop.f32.mrf.mxu0
  %83 = vdwg.mxu0
  %v84 = vmax.f32 %v78, 0.0
  %v85 = vmax.f32 %v81, 0.0
  %v86 = vpack.c.bf16 %v85, %v84
  %v87 = vld [vmem:[%s3] sm:$0xf]
  %v88 = vld [vmem:[%s3 + $0x4] sm:$0xf]
  %v89 = vld [vmem:[%s3 + $0x8] sm:$0xf]
  %v90 = vld [vmem:[%s3 + $0xc] sm:$0xf]
  %v91 = vld [vmem:[%s3 + $0x10] sm:$0xf]
  %v92 = vld [vmem:[%s3 + $0x14] sm:$0xf]
  %v93 = vld [vmem:[%s3 + $0x18] sm:$0xf]
  %v94 = vld [vmem:[%s3 + $0x1c] sm:$0xf]
  %v95 = vld [vmem:[%s3 + $0x20] sm:$0xf]
  %v96 = vld [vmem:[%s3 + $0x24] sm:$0xf]
  %v97 = vld [vmem:[%s3 + $0x28] sm:$0xf]
  %v98 = vld [vmem:[%s3 + $0x2c] sm:$0xf]
  %v99 = vld [vmem:[%s3 + $0x30] sm:$0xf]
  %v100 = vld [vmem:[%s3 + $0x34] sm:$0xf]
  %v101 = vld [vmem:[%s3 + $0x38] sm:$0xf]
  %v102 = vld [vmem:[%s3 + $0x3c] sm:$0xf]
  %v103 = vld [vmem:[%s4] sm:$0x1]
  %v105 = vlaneseq
  %v106 = vshrl.u32 %v105, 7
  %v107 = vsub.s32 0, %v106
  %v108 = vrot.slane %v103, %v107
  %v126 = vunpack.c.l.b16 %v87
  %v127 = vunpack.c.l.b16 %v88
  %v128 = vunpack.c.l.b16 %v89
  %v129 = vunpack.c.l.b16 %v90
  %v130 = vunpack.c.l.b16 %v91
  %v131 = vunpack.c.l.b16 %v92
  %v132 = vunpack.c.l.b16 %v93
  %v133 = vunpack.c.l.b16 %v94
  %v134 = vunpack.c.l.b16 %v95
  %v135 = vunpack.c.l.b16 %v96
  %v136 = vunpack.c.l.b16 %v97
  %v137 = vunpack.c.l.b16 %v98
  %v138 = vunpack.c.l.b16 %v99
  %v139 = vunpack.c.l.b16 %v100
  %v140 = vunpack.c.l.b16 %v101
  %v141 = vunpack.c.l.b16 %v102
  %v142 = vpack.c.b16 %v127, %v126
  %v143 = vpack.c.b16 %v129, %v128
  %v144 = vpack.c.b16 %v131, %v130
  %v145 = vpack.c.b16 %v133, %v132
  %v146 = vpack.c.b16 %v135, %v134
  %v147 = vpack.c.b16 %v137, %v136
  %v148 = vpack.c.b16 %v139, %v138
  %v149 = vpack.c.b16 %v141, %v140
  %158 = vmatprep.subr.bf16.mxu0 0
  %159 = vmatpush1.bf16.msra.mxu0 %v149
  %160 = vmatprep.subr.bf16.mxu0 0
  %161 = vmatpush1.bf16.msra.mxu0 %v148
  %162 = vmatprep.subr.bf16.mxu0 0
  %163 = vmatpush1.bf16.msra.mxu0 %v147
  %164 = vmatprep.subr.bf16.mxu0 0
  %165 = vmatpush1.bf16.msra.mxu0 %v146
  %166 = vmatprep.subr.bf16.mxu0 0
  %167 = vmatpush1.bf16.msra.mxu0 %v145
  %168 = vmatprep.subr.bf16.mxu0 0
  %169 = vmatpush1.bf16.msra.mxu0 %v144
  %170 = vmatprep.subr.bf16.mxu0 0
  %171 = vmatpush1.bf16.msra.mxu0 %v143
  %172 = vmatprep.subr.bf16.mxu0 0
  %173 = vmatpush1.bf16.msra.mxu0 %v142
  %174 = vmatprep.subr.bf16.mxu0 0
  %175 = vmatpush2.bf16.msra.mxu0 0
  %176 = vmatprep.subr.bf16.mxu0 0
  %177 = vmatpush2.bf16.msra.mxu0 0
  %178 = vmatprep.subr.bf16.mxu0 0
  %179 = vmatpush2.bf16.msra.mxu0 0
  %180 = vmatprep.subr.bf16.mxu0 0
  %181 = vmatpush2.bf16.msra.mxu0 0
  %182 = vmatprep.subr.bf16.mxu0 0
  %183 = vmatpush2.bf16.msra.mxu0 0
  %184 = vmatprep.subr.bf16.mxu0 0
  %185 = vmatpush2.bf16.msra.mxu0 0
  %186 = vmatprep.subr.bf16.mxu0 0
  %187 = vmatpush2.bf16.msra.mxu0 0
  %188 = vmatprep.subr.bf16.mxu0 0
  %189 = vmatpush2.bf16.msra.mxu0 0
  %190 = vmatprep.mubr.bf16.mxu0 0
  %191 = vmatmul.mubr.bf16.gmra.mxu0 %v86
  %v192 = vpop.f32.mrf.mxu0
  %v193 = vadd.f32 %v108, %v192
  %v194 = vpop.f32.mrf.mxu0
  %v195 = vpop.f32.mrf.mxu0
  %v196 = vadd.f32 %v108, %v195
  %v197 = vpop.f32.mrf.mxu0
  %198 = vdwg.mxu0
  %vm199 = vcmask 31744
  %200 = vst.msk [vmem:[%s5] sm:$0xff] %vm199, %v193
  %201 = vst.msk [vmem:[%s5 + $0x8] sm:$0xff] %vm199, %v196
  // Predicated region
  $region22: #{linear_qnn_forward.1} parent=0 // pred_check
    _
  $region23: #{linear_qnn_forward.1} parent=0 // pred_check_branch
    %203 = sbr.rel (0) target = $region25
  $region24: #{linear_qnn_forward.1} parent=0 // pred_region
    _
  $region25: #{linear_qnn_forward.1} parent=0 // pred_fallthru
    _
  // Predicated region
  $region26: #{linear_qnn_forward.1} parent=0 // pred_check
    _
  $region27: #{linear_qnn_forward.1} parent=0 // pred_check_branch
    %205 = sbr.rel (0) target = $region29
  $region28: #{linear_qnn_forward.1} parent=0 // pred_region
    _
  $region29: #{linear_qnn_forward.1} parent=0 // pred_fallthru
    _

</llo_original>
